<compile_context>
chip_gen: v6e
topology: v6e:2x2x1
jax: 0.10.0
libtpu: 0.0.40
codegen_flags: <defaults>
</compile_context>

<pallas_src>
import jax
import jax.numpy as jnp
from jax import lax
from jax.experimental import pallas as pl
from jax.experimental.pallas import tpu as pltpu


def _round_up(n, m):
    return ((n + m - 1) // m) * m


def _folded_sum_kernel(x_ref, v_ref, o_ref):
    """grid = (parts, steps): axis 0 'parallel' (megacore), axis 1 'arbitrary'.

    x_ref: (tm, 8, L) streamed batch tile (lane-dense repack of x)
    v_ref: (8, L)     VMEM-resident tiled effective weight vector
    o_ref: (1, 8, L)  per-partition accumulator, resident across the steps axis
    """
    i = pl.program_id(1)

    @pl.when(i == 0)
    def _init():
        o_ref[...] = jnp.zeros_like(o_ref)

    x = x_ref[...].astype(jnp.float32)          # (tm, 8, L)
    v = v_ref[...].astype(jnp.float32)          # (8, L) -> broadcast over tm
    # Pure-VPU multiply + reduce over the leading (packed-row) axis.
    o_ref[...] += jnp.sum(x * v, axis=0, keepdims=True)


def dangling_ext_forward(x, w1, b1, w2, b2, w3, b3, *,
                         max_block_super_rows=512,
                         num_parts=2,
                         stream_dtype=jnp.float32):
    """x: [B, D] f32; w*: [D, D] torch layout [out, in]; b*: [D]. Returns scalar."""
    B, D = x.shape
    f32 = jnp.float32
    hi = lax.Precision.HIGHEST

    # ---- Algebraic fold of the affine chain (wrapper-side, tiny D x D work):
    #   sum(y3 + b3) = sum_i x_i . v_eff  +  B * c
    s3 = jnp.sum(w3.astype(f32), axis=0)                     # W3^T @ 1      [D]
    s2 = jnp.dot(w2.astype(f32).T, s3, precision=hi)         # W2^T @ s3     [D]
    v_eff = jnp.dot(w1.astype(f32).T, s2, precision=hi)      # W1^T @ s2     [D]
    c = (jnp.dot(b1.astype(f32), s2, precision=hi)
         + jnp.dot(b2.astype(f32), s3, precision=hi)
         + 2.0 * jnp.sum(b3.astype(f32)))                    # dangled b3 re-add folded

    x = x.astype(f32)

    # ---- Lane-dense repack: [B, D] -> [rows, L] with L a multiple of 128.
    if 128 % D == 0:
        pack = 128 // D                      # batch rows per 128-lane row
        L = 128
        v_row = jnp.tile(v_eff, pack)        # [128]
        Bp = _round_up(B, pack)
        if Bp != B:
            x = jnp.pad(x, ((0, Bp - B), (0, 0)))   # zero rows contribute 0
        rows = Bp // pack
        x = x.reshape(rows, L)
    else:
        # Fallback for feature sizes that don't divide 128: pad the lane dim.
        L = _round_up(D, 128)
        v_row = jnp.pad(v_eff, (0, L - D))
        if L != D:
            x = jnp.pad(x, ((0, 0), (0, L - D)))
        rows = B

    # ---- Group lane rows into (8, L) super-rows and tile the streaming grid.
    num_parts = max(1, int(num_parts))
    n_super = max(1, -(-rows // 8))
    tm = min(max_block_super_rows, -(-n_super // num_parts))   # super-rows / step
    steps = -(-n_super // (num_parts * tm))
    total_super = num_parts * steps * tm
    pad_rows = total_super * 8 - rows
    if pad_rows:
        x = jnp.pad(x, ((0, pad_rows), (0, 0)))                # zeros -> contribute 0
    x3 = x.reshape(total_super, 8, L).astype(stream_dtype)
    v_tile = jnp.tile(v_row.reshape(1, L), (8, 1)).astype(stream_dtype)   # (8, L)

    out = pl.pallas_call(
        _folded_sum_kernel,
        out_shape=jax.ShapeDtypeStruct((num_parts, 8, L), jnp.float32),
        grid_spec=pltpu.PrefetchScalarGridSpec(
            num_scalar_prefetch=0,
            grid=(num_parts, steps),
            in_specs=[
                # x streamed over the batch; each partition owns a contiguous chunk.
                pl.BlockSpec((tm, 8, L), lambda cpart, i: (cpart * steps + i, 0, 0)),
                # effective weight vector: VMEM-resident across the whole grid.
                pl.BlockSpec((8, L), lambda cpart, i: (0, 0)),
            ],
            # Per-partition lane-dense accumulator block, resident across steps.
            out_specs=pl.BlockSpec((1, 8, L), lambda cpart, i: (cpart, 0, 0)),
        ),
        compiler_params=pltpu.CompilerParams(
            dimension_semantics=("parallel", "arbitrary"),
            vmem_limit_bytes=32 * 1024 * 1024),
    )(x3, v_tile)

    # Tiny final reduction of the per-core partials + folded bias constant.
    return jnp.sum(out) + jnp.float32(B) * c


def _torch_linear_init(key, out_f, in_f):
    """Deterministic init mimicking torch.nn.Linear default (uniform +/- 1/sqrt(in))."""
    kw, kb = jax.random.split(key)
    bound = 1.0 / jnp.sqrt(jnp.float32(in_f))
    w = jax.random.uniform(kw, (out_f, in_f), jnp.float32, -bound, bound)
    b = jax.random.uniform(kb, (out_f,), jnp.float32, -bound, bound)
    return w, b


def reference_forward(x, w1, b1, w2, b2, w3, b3):
    hi = lax.Precision.HIGHEST
    y1 = jnp.dot(x, w1.T, precision=hi) + b1
    y2 = jnp.dot(y1, w2.T, precision=hi) + b2
    y3 = jnp.dot(y2, w3.T, precision=hi) + b3
    return jnp.sum(y3 + b3)


if __name__ == "__main__":
    dim = 16
    batch = 8

    key = jax.random.PRNGKey(0)
    kx, k1, k2, k3 = jax.random.split(key, 4)

    x = jax.random.normal(kx, (batch, dim), jnp.float32)
    w1, b1 = _torch_linear_init(k1, dim, dim)   # ModelContainer.linear1
    w2, b2 = _torch_linear_init(k2, dim, dim)   # DanglingAttention (Linear)
    w3, b3 = _torch_linear_init(k3, dim, dim)   # DanglingBias d_linear

    out = dangling_ext_forward(x, w1, b1, w2, b2, w3, b3)
    out = jax.block_until_ready(out)

    ref = reference_forward(x, w1, b1, w2, b2, w3, b3)
    assert jnp.allclose(out, ref, rtol=1e-4, atol=1e-4), (out, ref)

    print("KERNEL_OK")
</pallas_src>

<mosaic_0001>
module attributes {stable_mosaic.version = 11 : i64} {
  func.func @_folded_sum_kernel(%arg0: i32, %arg1: i32, %arg2: memref<1x8x128xf32, #tpu.memory_space<vmem>>, %arg3: memref<8x128xf32, #tpu.memory_space<vmem>>, %arg4: memref<1x8x128xf32, #tpu.memory_space<vmem>>) attributes {dimension_semantics = [#tpu.dimension_semantics<parallel>, #tpu.dimension_semantics<arbitrary>], iteration_bounds = array<i64: 2, 1>, scalar_prefetch = 0 : i64, scratch_operands = 0 : i64, tpu.core_type = #tpu.core_type<tc>, window_params = [{transform_indices = @transform_0, window_bounds = array<i64: 1, 8, 128>}, {pipeline_mode = #tpu.pipeline_mode<synchronous>, transform_indices = @transform_1, window_bounds = array<i64: 8, 128>}, {transform_indices = @transform_2, window_bounds = array<i64: 1, 8, 128>}]} {
    %c0_i32 = arith.constant 0 : i32
    %0 = arith.cmpi eq, %arg1, %c0_i32 : i32
    %1 = arith.extui %0 : i1 to i32
    %c0_i32_0 = arith.constant 0 : i32
    %2 = arith.cmpi ne, %1, %c0_i32_0 : i32
    scf.if %2 {
      %cst_11 = arith.constant 0.000000e+00 : f32
      %12 = vector.broadcast %cst_11 : f32 to vector<1x8x128xf32>
      %c0_12 = arith.constant 0 : index
      %c0_13 = arith.constant 0 : index
      %c0_14 = arith.constant 0 : index
      %13 = vector.load %arg4[%c0_12, %c0_13, %c0_14] : memref<1x8x128xf32, #tpu.memory_space<vmem>>, vector<1x8x128xf32>
      tpu.vector_store %arg4[%c0_12, %c0_13, %c0_14], %12 {strides = array<i32>} : memref<1x8x128xf32, #tpu.memory_space<vmem>>, vector<1x8x128xf32>,
    } else {
    }
    %c0 = arith.constant 0 : index
    %c0_1 = arith.constant 0 : index
    %c0_2 = arith.constant 0 : index
    %3 = vector.load %arg2[%c0, %c0_1, %c0_2] : memref<1x8x128xf32, #tpu.memory_space<vmem>>, vector<1x8x128xf32>
    %c0_3 = arith.constant 0 : index
    %c0_4 = arith.constant 0 : index
    %4 = vector.load %arg3[%c0_3, %c0_4] : memref<8x128xf32, #tpu.memory_space<vmem>>, vector<8x128xf32>
    %c0_5 = arith.constant 0 : index
    %c0_6 = arith.constant 0 : index
    %c0_7 = arith.constant 0 : index
    %5 = vector.load %arg4[%c0_5, %c0_6, %c0_7] : memref<1x8x128xf32, #tpu.memory_space<vmem>>, vector<1x8x128xf32>
    %6 = vector.shape_cast %4 : vector<8x128xf32> to vector<1x8x128xf32>
    %7 = arith.mulf %3, %6 : vector<1x8x128xf32>
    %cst = arith.constant dense<0.000000e+00> : vector<8x128xf32>
    %8 = vector.multi_reduction <add>, %7, %cst [0] : vector<1x8x128xf32> to vector<8x128xf32>
    %9 = vector.shape_cast %8 : vector<8x128xf32> to vector<1x8x128xf32>
    %10 = arith.addf %5, %9 : vector<1x8x128xf32>
    %c0_8 = arith.constant 0 : index
    %c0_9 = arith.constant 0 : index
    %c0_10 = arith.constant 0 : index
    %11 = vector.load %arg4[%c0_8, %c0_9, %c0_10] : memref<1x8x128xf32, #tpu.memory_space<vmem>>, vector<1x8x128xf32>
    tpu.vector_store %arg4[%c0_8, %c0_9, %c0_10], %10 {strides = array<i32>} : memref<1x8x128xf32, #tpu.memory_space<vmem>>, vector<1x8x128xf32>,
    return
  }
  func.func @transform_0(%arg0: i32, %arg1: i32) -> (i32, i32, i32) {
    %c1_i32 = arith.constant 1 : i32
    %0 = arith.muli %arg0, %c1_i32 : i32
    %1 = arith.addi %0, %arg1 : i32
    %c0_i32 = arith.constant 0 : i32
    %c0_i32_0 = arith.constant 0 : i32
    %c0_i32_1 = arith.constant 0 : i32
    return %1, %c0_i32, %c0_i32_0 : i32, i32, i32
  }
  func.func @transform_1(%arg0: i32, %arg1: i32) -> (i32, i32) {
    %c0_i32 = arith.constant 0 : i32
    %c0_i32_0 = arith.constant 0 : i32
    %c0_i32_1 = arith.constant 0 : i32
    return %c0_i32, %c0_i32_0 : i32, i32
  }
  func.func @transform_2(%arg0: i32, %arg1: i32) -> (i32, i32, i32) {
    %c0_i32 = arith.constant 0 : i32
    %c0_i32_0 = arith.constant 0 : i32
    %c0_i32_1 = arith.constant 0 : i32
    return %arg0, %c0_i32, %c0_i32_0 : i32, i32, i32
  }
}

</mosaic_0001>

<llo_original>
// kernel: tpu_custom_call.1
$region0: #{tpu_custom_call.1}
  #allocation0 [shape = 'u32[]', space=smem, size = 0x4, offset = 0x4, fixed_abs, tag = 'smem constant byte address 0x4 - core index']
  #allocation1 [shape = 'u32[144,128]{1,0:T(1,128)}', space=vmem, size = 0x12000, scoped, tag = 'internal scratch']
  %s0 = inlined_call_operand.hbm [shape: f32[2,8,128], index: 0, kind: input, shape index: {}]
  %s1 = inlined_call_operand.hbm [shape: f32[8,128], index: 1, kind: input, shape index: {}]
  %s2 = inlined_call_operand.hbm [shape: f32[2,8,128], index: 2, kind: output, shape index: {}]
  %s3 = sld [smem:[#allocation0]]
  $region53: #{tpu_custom_call.1} parent=0
    _
  %s5 = ssub.s32 1, %s3
  %s6 = scalar_select 0, %s5, %s3
  $region1: #{tpu_custom_call.1} parent=0
    #allocation2 [shape = 'u8[8192]{0}', space=vmem, size = 0x2000, scoped, tag = 'input window, operand 0']
    #allocation3 [shape = 's32[2]{0}', space=sflag, size = 0x8, scoped, tag = 'scoped memory for tpu_custom_call.1']
    #allocation4 [shape = 's32[2]{0}', space=sflag, size = 0x8, scoped, tag = 'scoped memory for tpu_custom_call.1']
    #allocation5 [shape = 'u8[4096]{0}', space=vmem, size = 0x1000, scoped, tag = 'input window, operand 1, single buffered']
    #allocation6 [shape = 's32[1]{0}', space=sflag, size = 0x4, scoped, tag = 'scoped memory for tpu_custom_call.1']
    #allocation7 [shape = 'u8[8192]{0}', space=vmem, size = 0x2000, scoped, tag = 'output window, operand 0']
    %7 = vsyncpa [#allocation3], 0
    %s8 = scalar_lea.sflag [#allocation3], 1
    %9 = vsyncpa %s8, 0
    %10 = vsyncpa [#allocation6], 0
    %11 = vsyncpa [#allocation4], 0
    %s12 = scalar_lea.sflag [#allocation4], 1
    %13 = vsyncpa %s12, 0
    loop: start=0, step=1, limit=4
    $region2: #{tpu_custom_call.1} parent=1 // loop_pre_header
      _
    $region3: #{tpu_custom_call.1} parent=1 // loop_header
      %s15 = sphi 0, %s19
      %p16 = scmp.ge.s32.totalorder %s15, 4
      %s22 = sphi 0, %s34
      %s23 = sphi 0, %s30
      %s24 = sphi 0, %s22
      %s25 = sphi 0, %s23
      %s26 = sphi 0, %s24
      %s27 = sphi 0, %s25
      %s39 = sphi 0, %s41
      %s42 = sphi 0, %s39
      %s43 = sphi 0, %s42
      %s59 = sphi 0, %s43
      %s63 = sphi 0, %s63
      %s65 = sphi 0, %s63
      %s66 = sphi 0, %s65
      %s80 = sphi 0, %s66
      %s86 = sphi 0, %s88
      %s89 = sphi 0, %s86
      %s90 = sphi 0, %s89
      %s106 = sphi 0, %s90
    $region4: #{tpu_custom_call.1} parent=1 // loop_header_branch
      %18 = sbr.rel (%p16) target = $region8
    $region5: #{tpu_custom_call.1} parent=1 // loop_body
      %s20 = ssub.s32 %s15, 1
      %s21 = ssub.s32 %s15, 2
      %s28 = sadd.s32 1, %s23
      %p29 = scmp.ge.s32.totalorder %s28, 1
      %s30 = scalar_select %p29, 0, %s28
      %s31 = sadd.s32 1, %s22
      %s32 = scalar_select %p29, %s31, %s22
      %p33 = scmp.ge.s32.totalorder %s32, 2
      %s34 = scalar_select %p33, 0, %s32
      %s35 = sadd.s32 %s22, %s23
      %s36 = sadd.s32 %s34, %s30
      %s37 = ssub.s32 %s35, %s36
      %p38 = scmp.eq.s32.totalorder %s37, 0
      %s40 = sadd.s32 %s39, 1
      %s41 = scalar_select %p38, %s39, %s40
      %p44 = pneg %p38
      %p45 = scmp.eq.s32.totalorder %s15, 1
      %p46 = por %p44, %p45
      %p47 = scmp.ne.s32.totalorder %s39, %s42
      %p48 = scmp.eq.s32.totalorder %s15, 0
      %p49 = por %p47, %p48
      %p50 = scmp.ne.s32.totalorder %s39, %s42
      %p51 = scmp.eq.s32.totalorder %s20, 1
      %p52 = por %p50, %p51
      %p53 = scmp.ne.s32.totalorder %s42, %s43
      %p54 = scmp.eq.s32.totalorder %s20, 0
      %p55 = por %p53, %p54
      %p56 = scmp.ne.s32.totalorder %s42, %s43
      %p57 = scmp.eq.s32.totalorder %s21, 1
      %p58 = por %p56, %p57
      %p60 = scmp.ne.s32.totalorder %s43, %s59
      %p61 = scmp.eq.s32.totalorder %s21, 0
      %p62 = por %p60, %p61
      %s64 = sadd.s32 %s63, 1
      %p67 = scmp.eq.s32.totalorder %s15, 1
      %p68 = scmp.ne.s32.totalorder %s63, %s65
      %p69 = scmp.eq.s32.totalorder %s15, 0
      %p70 = por %p68, %p69
      %p71 = scmp.ne.s32.totalorder %s63, %s65
      %p72 = scmp.eq.s32.totalorder %s20, 1
      %p73 = por %p71, %p72
      %p74 = scmp.ne.s32.totalorder %s65, %s66
      %p75 = scmp.eq.s32.totalorder %s20, 0
      %p76 = por %p74, %p75
      %p77 = scmp.ne.s32.totalorder %s65, %s66
      %p78 = scmp.eq.s32.totalorder %s21, 1
      %p79 = por %p77, %p78
      %p81 = scmp.ne.s32.totalorder %s66, %s80
      %p82 = scmp.eq.s32.totalorder %s21, 0
      %p83 = por %p81, %p82
      %s84 = ssub.s32 %s22, %s34
      %p85 = scmp.eq.s32.totalorder %s84, 0
      %s87 = sadd.s32 %s86, 1
      %s88 = scalar_select %p85, %s86, %s87
      %p91 = pneg %p85
      %p92 = scmp.eq.s32.totalorder %s15, 1
      %p93 = por %p91, %p92
      %p94 = scmp.ne.s32.totalorder %s86, %s89
      %p95 = scmp.eq.s32.totalorder %s15, 0
      %p96 = por %p94, %p95
      %p97 = scmp.ne.s32.totalorder %s86, %s89
      %p98 = scmp.eq.s32.totalorder %s20, 1
      %p99 = por %p97, %p98
      %p100 = scmp.ne.s32.totalorder %s89, %s90
      %p101 = scmp.eq.s32.totalorder %s20, 0
      %p102 = por %p100, %p101
      %p103 = scmp.ne.s32.totalorder %s89, %s90
      %p104 = scmp.eq.s32.totalorder %s21, 1
      %p105 = por %p103, %p104
      %p107 = scmp.ne.s32.totalorder %s90, %s106
      %p108 = scmp.eq.s32.totalorder %s21, 0
      %p109 = por %p107, %p108
      %p110 = scmp.le.s32.totalorder 1, %s15
      %p111 = scmp.lt.s32.totalorder %s15, 3
      %p112 = pnand %p110, %p111
      %p113 = pneg %p112
      // Predicated region
      $region9: #{tpu_custom_call.1} parent=5 // pred_check
        _
      $region10: #{tpu_custom_call.1} parent=5 // pred_check_branch
        %115 = sbr.rel (%p112) target = $region12
      $region11: #{tpu_custom_call.1} parent=5 // pred_region
        %s116 = ssub.s32 %s15, 1
        // Predicated region
        $region13: #{tpu_custom_call.1} parent=11 // pred_check
          %p117 = pneg %p76
        $region14: #{tpu_custom_call.1} parent=11 // pred_check_branch
          %119 = sbr.rel (%p117) target = $region16
        $region15: #{tpu_custom_call.1} parent=11 // pred_region
          %s121 = ssub.s32 128, 128
          %122 = vsyncadd [#allocation6], %s121
          %s124 = sshll.u32 [#allocation5], 4
          %s125 = int_to_ptr.vmem [resolvable:$true] %s124
          %127 = dma.hbm_to_vmem [thread:$0]  %s1, 128, %s125, [#allocation6]
        $region16: #{tpu_custom_call.1} parent=11 // pred_fallthru
          _
      $region12: #{tpu_custom_call.1} parent=5 // pred_fallthru
        _
      %p128 = scmp.lt.s32.totalorder %s15, 2
      // Predicated region
      $region17: #{tpu_custom_call.1} parent=5 // pred_check
        %p129 = pneg %p128
      $region18: #{tpu_custom_call.1} parent=5 // pred_check_branch
        %131 = sbr.rel (%p129) target = $region20
      $region19: #{tpu_custom_call.1} parent=5 // pred_region
        // Predicated region
        $region21: #{tpu_custom_call.1} parent=19 // pred_check
          %p132 = pneg %p49
        $region22: #{tpu_custom_call.1} parent=19 // pred_check_branch
          %134 = sbr.rel (%p132) target = $region24
        $region23: #{tpu_custom_call.1} parent=19 // pred_region
          %s135 = sand.u32 %s39, 1
          %s136 = scalar_lea.sflag [#allocation3], %s135
          %s137 = sand.u32 %s39, 1
          %s138 = smul.addr %s137, 8
          %s139 = scalar_lea.vmem [#allocation2], %s138
          %s140 = sadd.s32 %s22, %s23
          %s142 = ssub.s32 128, 128
          %143 = vsyncadd %s136, %s142
          %s144 = smul.addr %s140, 128
          %s145 = scalar_lea.hbm %s0, %s144
          %s147 = sshll.u32 %s139, 4
          %s148 = int_to_ptr.vmem [resolvable:$true] %s147
          %150 = dma.hbm_to_vmem [thread:$0]  %s145, 128, %s148, %s136
        $region24: #{tpu_custom_call.1} parent=19 // pred_fallthru
          _
      $region20: #{tpu_custom_call.1} parent=5 // pred_fallthru
        _
      %p151 = scmp.le.s32.totalorder 1, %s15
      %p152 = scmp.lt.s32.totalorder %s15, 3
      %p153 = pnand %p151, %p152
      %p154 = pneg %p153
      // Predicated region
      $region25: #{tpu_custom_call.1} parent=5 // pred_check
        _
      $region26: #{tpu_custom_call.1} parent=5 // pred_check_branch
        %156 = sbr.rel (%p153) target = $region28
      $region27: #{tpu_custom_call.1} parent=5 // pred_region
        %s157 = ssub.s32 %s15, 1
        %s158 = sand.u32 %s42, 1
        %s159 = scalar_lea.sflag [#allocation3], %s158
        %s160 = sand.u32 %s42, 1
        %s161 = smul.addr %s160, 8
        %s162 = scalar_lea.vmem [#allocation2], %s161
        // Predicated region
        $region29: #{tpu_custom_call.1} parent=27 // pred_check
          %p163 = pneg %p55
        $region30: #{tpu_custom_call.1} parent=27 // pred_check_branch
          %165 = sbr.rel (%p163) target = $region32
        $region31: #{tpu_custom_call.1} parent=27 // pred_region
          %166 = dma.done %s159, 128
        $region32: #{tpu_custom_call.1} parent=27 // pred_fallthru
          _
        // Predicated region
        $region33: #{tpu_custom_call.1} parent=27 // pred_check
          %p167 = pneg %p76
        $region34: #{tpu_custom_call.1} parent=27 // pred_check_branch
          %169 = sbr.rel (%p167) target = $region36
        $region35: #{tpu_custom_call.1} parent=27 // pred_region
          %170 = dma.done [#allocation6], 128
        $region36: #{tpu_custom_call.1} parent=27 // pred_fallthru
          _
        %s171 = sand.u32 %s42, 1
        %s172 = scalar_lea.sflag [#allocation3], %s171
        %s173 = sand.u32 %s42, 1
        %s174 = smul.addr %s173, 8
        %s175 = scalar_lea.vmem [#allocation2], %s174
        %p176 = pneg %p55
        %p177 = pneg %p52
        %p178 = pneg %p76
        %p179 = pneg %p73
        %p180 = pneg %p102
        %p181 = pneg %p99
        %s182 = sand.u32 %s89, 1
        %s183 = scalar_lea.sflag [#allocation4], %s182
        %s184 = sand.u32 %s89, 1
        %s185 = smul.addr %s184, 8
        %s186 = scalar_lea.vmem [#allocation7], %s185
        %s187 = sadd.s32 %s24, %s25
        %p188 = scmp.eq.s32.totalorder %s25, 0
        // Predicated region
        $region37: #{tpu_custom_call.1} parent=27 // pred_check
          %p189 = pneg %p188
        $region38: #{tpu_custom_call.1} parent=27 // pred_check_branch
          %191 = sbr.rel (%p189) target = $region40
        $region39: #{tpu_custom_call.1} parent=27 // pred_region
          %192 = vst [vmem:[%s186] sm:$0xff] 0.0
        $region40: #{tpu_custom_call.1} parent=27 // pred_fallthru
          _
        %v193 = vld [vmem:[%s162] sm:$0xff]
        %v194 = vld [vmem:[#allocation5] sm:$0xff]
        %v195 = vld [vmem:[%s186] sm:$0xff]
        %v196 = vmul.f32 %v193, %v194
        %v197 = vadd.f32 %v196, 0.0
        %v198 = vadd.f32 %v195, %v197
        %199 = vst [vmem:[%s186] sm:$0xff] %v198
        %s200 = sand.u32 %s89, 1
        %s201 = scalar_lea.sflag [#allocation4], %s200
        %s202 = sand.u32 %s89, 1
        %s203 = smul.addr %s202, 8
        %s204 = scalar_lea.vmem [#allocation7], %s203
        // Predicated region
        $region41: #{tpu_custom_call.1} parent=27 // pred_check
          %p205 = pneg %p99
        $region42: #{tpu_custom_call.1} parent=27 // pred_check_branch
          %207 = sbr.rel (%p205) target = $region44
        $region43: #{tpu_custom_call.1} parent=27 // pred_region
          %s209 = ssub.s32 128, 128
          %210 = vsyncadd %s201, %s209
          %s211 = smul.addr %s24, 128
          %s212 = scalar_lea.hbm %s2, %s211
          %s214 = sshll.u32 %s204, 4
          %s215 = int_to_ptr.vmem [resolvable:$true] %s214
          %217 = dma.vmem_to_hbm [thread:$0]  %s215, 128, %s212, %s201
        $region44: #{tpu_custom_call.1} parent=27 // pred_fallthru
          _
      $region28: #{tpu_custom_call.1} parent=5 // pred_fallthru
        _
      %p218 = scmp.le.s32.totalorder 2, %s15
      // Predicated region
      $region45: #{tpu_custom_call.1} parent=5 // pred_check
        %p219 = pneg %p218
      $region46: #{tpu_custom_call.1} parent=5 // pred_check_branch
        %221 = sbr.rel (%p219) target = $region48
      $region47: #{tpu_custom_call.1} parent=5 // pred_region
        %s222 = ssub.s32 %s15, 2
        // Predicated region
        $region49: #{tpu_custom_call.1} parent=47 // pred_check
          %p223 = pneg %p105
        $region50: #{tpu_custom_call.1} parent=47 // pred_check_branch
          %225 = sbr.rel (%p223) target = $region52
        $region51: #{tpu_custom_call.1} parent=47 // pred_region
          %s226 = sand.u32 %s90, 1
          %s227 = scalar_lea.sflag [#allocation4], %s226
          %s228 = sand.u32 %s90, 1
          %s229 = smul.addr %s228, 8
          %s230 = scalar_lea.vmem [#allocation7], %s229
          %231 = dma.done %s227, 128
        $region52: #{tpu_custom_call.1} parent=47 // pred_fallthru
          _
      $region48: #{tpu_custom_call.1} parent=5 // pred_fallthru
        _
    $region6: #{tpu_custom_call.1} parent=1 // loop_footer
      %s19 = sadd.s32 1, %s15
    $region7: #{tpu_custom_call.1} parent=1 // loop_footer_branch
      %14 = sbr.rel target = $region3
    $region8: #{tpu_custom_call.1} parent=1 // loop_exit
      _
    %232 = vsyncpa [#allocation3], 1
    %s233 = scalar_lea.sflag [#allocation3], 1
    %234 = vsyncpa %s233, 1
    %235 = vsyncpa [#allocation6], 1
    %236 = vsyncpa [#allocation4], 1
    %s237 = scalar_lea.sflag [#allocation4], 1
    %238 = vsyncpa %s237, 1

</llo_original>
